<compile_context>
chip_gen: v6e
topology: v6e:2x2x1
jax: 0.10.0
libtpu: 0.0.40
codegen_flags: <defaults>
</compile_context>

<pallas_src>
import functools
import math

import jax
import jax.numpy as jnp
from jax.experimental import pallas as pl
from jax.experimental.pallas import tpu as pltpu


# ----------------------------------------------------------------------------
# Fast bounded-range sine (VALU-friendly; TPU has no EUP sin).
# ----------------------------------------------------------------------------
_INV_PI = 0.3183098861837907
_PI_HI = 3.140625                      # exactly representable in f32
_PI_LO = 9.676535897932046e-4          # pi - _PI_HI


def _fast_sin(x):
    """sin(x) for f32 args of moderate magnitude (|x| << 1e5).

    Round-to-nearest-multiple-of-pi reduction (2-term Cody-Waite) followed by
    an odd degree-11 polynomial on [-pi/2, pi/2]; abs error ~1e-7, roughly 2x
    fewer VALU ops than the generic jnp.sin lowering.
    """
    k = jnp.floor(x * _INV_PI + 0.5)
    r = x - k * _PI_HI
    r = r - k * _PI_LO
    # sign = (-1)^k, computed entirely in f32 (no int round-trip).
    parity = k - 2.0 * jnp.floor(k * 0.5)
    sign = 1.0 - 2.0 * parity
    r2 = r * r
    p = -2.3889859e-08
    p = p * r2 + 2.7525562e-06
    p = p * r2 + -1.9840874e-04
    p = p * r2 + 8.3333310e-03
    p = p * r2 + -1.6666667e-01
    return sign * (r + r * r2 * p)


# ----------------------------------------------------------------------------
# Kernel: L fused residual sine blocks on one lane-dense batch tile.
# ----------------------------------------------------------------------------
def _stack_kernel(x_ref, w1_ref, b1_ref, w2_ref, b2_ref, o_ref, *,
                  weight_2s, use_fast_sin):
    sin_fn = _fast_sin if use_fast_sin else jnp.sin
    h = x_ref[...].astype(jnp.float32)
    for l in range(len(weight_2s)):           # unrolled at trace time (small L)
        s1 = sin_fn(jnp.dot(h, w1_ref[l],
                            preferred_element_type=jnp.float32) + b1_ref[l])
        s2 = sin_fn(jnp.dot(s1, w2_ref[l],
                            preferred_element_type=jnp.float32) + b2_ref[l])
        h = h + s2
        w2s = float(weight_2s[l])
        if w2s != 1.0:                        # trace-time constant; dead when 1.0
            h = w2s * h
    o_ref[...] = h.astype(o_ref.dtype)


# ----------------------------------------------------------------------------
# Wrapper helpers.
# ----------------------------------------------------------------------------
def _packing_factor(features, batch):
    """Rows packed per 128-lane row (block-diagonal weights)."""
    if features < 128 and 128 % features == 0 and batch % (128 // features) == 0:
        return 128 // features
    return 1


def pack_activations(x, packing):
    """[B, F] -> [B // packing, packing * F].

    NOTE: on TPU's (8,128)-tiled layouts this reshape may lower to a real
    relayout copy (lanes pad F<128 up to 128).  For a full SIREN network pack
    ONCE at the input, run every layer on the packed layout
    (residual_sine_stack_packed), and unpack once at the output."""
    B, F = x.shape
    assert B % packing == 0
    return x.reshape(B // packing, packing * F)


def unpack_activations(x_p, features):
    Bp, Fp = x_p.shape
    assert Fp % features == 0
    return x_p.reshape(Bp * (Fp // features), features)


def prepare_stack_params(layer_params, *, omega_0=30.0, ave_first, ave_second,
                         packing=1):
    """Fold scalars into the (transposed) weights and build packed, stacked params.

    layer_params: sequence of (w1, b1, w2, b2) in PyTorch layout (out, in).
    Returns (w1_p [L,Fp,Fp], b1_p [L,1,Fp], w2_p [L,Fp,Fp], b2_p [L,1,Fp],
             weight_2s tuple).  Hoist this out of hot loops / precompute once.
    """
    eye_p = jnp.eye(packing, dtype=jnp.float32)
    w1s, b1s, w2s, b2s = [], [], [], []
    for l, (w1, b1, w2, b2) in enumerate(layer_params):
        weight_1 = 0.5 if ave_first[l] else 1.0
        # sin(omega0*((w1_s*x)@W1.T + b1)) == sin(x@(w1_s*omega0*W1.T) + omega0*b1)
        w1_t = (weight_1 * omega_0) * jnp.asarray(w1, jnp.float32).T
        w2_t = omega_0 * jnp.asarray(w2, jnp.float32).T
        b1_v = omega_0 * jnp.asarray(b1, jnp.float32)
        b2_v = omega_0 * jnp.asarray(b2, jnp.float32)
        w1s.append(jnp.kron(eye_p, w1_t))                 # [Fp, Fp] block-diag
        w2s.append(jnp.kron(eye_p, w2_t))
        b1s.append(jnp.tile(b1_v, packing)[None, :])      # [1, Fp]
        b2s.append(jnp.tile(b2_v, packing)[None, :])
    weight_2s = tuple(0.5 if a else 1.0 for a in ave_second)
    return (jnp.stack(w1s), jnp.stack(b1s), jnp.stack(w2s), jnp.stack(b2s),
            weight_2s)


def _choose_batch_tile(num_rows, target_rows):
    """Largest multiple-of-8 divisor of num_rows that is <= target_rows.

    Prefers at least 2 grid steps when the batch allows it so the "parallel"
    grid axis can shard across v7x's two TensorCores."""
    tile = None
    for cand in range(min(target_rows, num_rows), 7, -1):
        if num_rows % cand == 0 and cand % 8 == 0:
            tile = cand
            break
    if tile is None:
        tile = num_rows                      # block == full dim is always legal
    if num_rows // tile < 2:
        half = num_rows // 2
        if num_rows % 2 == 0 and half % 8 == 0:
            tile = half
    return tile


# ----------------------------------------------------------------------------
# pallas_call wrapper (packed layout).
# ----------------------------------------------------------------------------
def residual_sine_stack_packed(x_p, w1_p, b1_p, w2_p, b2_p, weight_2s, *,
                               block_rows_packed=4096, use_fast_sin=True):
    """Run L fused residual sine blocks on packed activations [Bp, Fp]."""
    Bp, Fp = x_p.shape
    L = w1_p.shape[0]
    tbp = _choose_batch_tile(Bp, block_rows_packed)
    assert Bp % tbp == 0
    grid = Bp // tbp

    kernel = functools.partial(
        _stack_kernel,
        weight_2s=tuple(float(w) for w in weight_2s),
        use_fast_sin=bool(use_fast_sin),
    )

    # Weights/biases are grid-invariant; once they get large the default second
    # pipeline buffer is pure VMEM waste, so request single buffering there.
    resident_mode = pl.Buffered(1) if Fp >= 512 else None

    def _resident(shape):
        if resident_mode is not None:
            return pl.BlockSpec(shape, lambda i: (0, 0, 0),
                                pipeline_mode=resident_mode)
        return pl.BlockSpec(shape, lambda i: (0, 0, 0))

    # VMEM budget: 2x double-buffered activation tiles (x in + out), ~4
    # activation-sized intermediates inside the body, plus resident weights.
    # Raised above the scoped defaults (16 MiB v5e / 32 MiB v6e+v7x) so the
    # large batch tiles actually pipeline; kept well under v7x's 64 MiB.
    act_bytes = tbp * Fp * 4
    w_copies = 1 if resident_mode is not None else 2
    weight_bytes = w_copies * L * 2 * (Fp * Fp + Fp) * 4
    est = act_bytes * (2 * 2 + 4) + weight_bytes
    vmem_limit = int(min(max(int(est * 1.25) + (1 << 20), 32 << 20), 128 << 20))

    cost = pl.CostEstimate(
        flops=4 * L * Bp * Fp * Fp,              # 2 matmuls per layer
        transcendentals=2 * L * Bp * Fp,         # 2 sins per element per layer
        bytes_accessed=2 * Bp * Fp * 4 + 2 * L * (Fp * Fp + Fp) * 4,
    )

    return pl.pallas_call(
        kernel,
        out_shape=jax.ShapeDtypeStruct((Bp, Fp), x_p.dtype),
        grid_spec=pltpu.PrefetchScalarGridSpec(
            num_scalar_prefetch=0,
            grid=(grid,),
            in_specs=[
                pl.BlockSpec((tbp, Fp), lambda i: (i, 0)),   # activation tile
                _resident((L, Fp, Fp)),                      # W1' (resident)
                _resident((L, 1, Fp)),                       # b1'
                _resident((L, Fp, Fp)),                      # W2' (resident)
                _resident((L, 1, Fp)),                       # b2'
            ],
            out_specs=pl.BlockSpec((tbp, Fp), lambda i: (i, 0)),
        ),
        compiler_params=pltpu.CompilerParams(
            dimension_semantics=("parallel",),
            vmem_limit_bytes=vmem_limit,
        ),
        cost_estimate=cost,
    )(x_p, w1_p, b1_p, w2_p, b2_p)


# ----------------------------------------------------------------------------
# Public API on [B, F] activations.
# ----------------------------------------------------------------------------
def residual_sine_stack(x, layer_params, *, omega_0=30.0, ave_first=None,
                        ave_second=None, block_rows=8192, use_fast_sin=True,
                        pack_lanes=True):
    """Apply L ResidualSineLayers (sequentially) in one pallas_call.

    x: [B, F] float32.  layer_params: list of (w1, b1, w2, b2) PyTorch-layout.
    For repeated calls, precompute with prepare_stack_params + keep activations
    packed across the whole network via residual_sine_stack_packed.
    """
    B, F = x.shape
    L = len(layer_params)
    if ave_first is None:
        ave_first = [False] * L
    if ave_second is None:
        ave_second = [False] * L

    P = _packing_factor(F, B) if pack_lanes else 1
    params = prepare_stack_params(layer_params, omega_0=omega_0,
                                  ave_first=ave_first, ave_second=ave_second,
                                  packing=P)
    x_p = pack_activations(x, P) if P > 1 else x
    out_p = residual_sine_stack_packed(
        x_p, *params,
        block_rows_packed=max(block_rows // P, 8),
        use_fast_sin=use_fast_sin)
    return unpack_activations(out_p, F) if P > 1 else out_p


def residual_sine_layer(x, w1, b1, w2, b2, *, omega_0=30.0, ave_first=False,
                        ave_second=False, block_rows=8192, use_fast_sin=True,
                        pack_lanes=True):
    """Single ResidualSineLayer forward (matches the PyTorch module)."""
    return residual_sine_stack(
        x, [(w1, b1, w2, b2)], omega_0=omega_0,
        ave_first=[ave_first], ave_second=[ave_second],
        block_rows=block_rows, use_fast_sin=use_fast_sin, pack_lanes=pack_lanes)


# ----------------------------------------------------------------------------
# Reference + init (for the self-test).
# ----------------------------------------------------------------------------
def init_params(key, features, omega_0=30.0):
    """Matches the PyTorch module's init_weights(): weights ~ U(+-sqrt(6/F)/omega0),
    biases keep the nn.Linear default ~ U(+-1/sqrt(F))."""
    kw1, kb1, kw2, kb2 = jax.random.split(key, 4)
    w_bound = math.sqrt(6.0 / features) / omega_0
    b_bound = 1.0 / math.sqrt(features)
    w1 = jax.random.uniform(kw1, (features, features), jnp.float32,
                            minval=-w_bound, maxval=w_bound)
    w2 = jax.random.uniform(kw2, (features, features), jnp.float32,
                            minval=-w_bound, maxval=w_bound)
    b1 = jax.random.uniform(kb1, (features,), jnp.float32,
                            minval=-b_bound, maxval=b_bound)
    b2 = jax.random.uniform(kb2, (features,), jnp.float32,
                            minval=-b_bound, maxval=b_bound)
    return w1, b1, w2, b2


def residual_sine_ref(x, w1, b1, w2, b2, *, omega_0=30.0,
                      ave_first=False, ave_second=False):
    weight_1 = 0.5 if ave_first else 1.0
    weight_2 = 0.5 if ave_second else 1.0
    sine_1 = jnp.sin(omega_0 * ((weight_1 * x) @ w1.T + b1))
    sine_2 = jnp.sin(omega_0 * (sine_1 @ w2.T + b2))
    return weight_2 * (x + sine_2)


if __name__ == "__main__":
    key = jax.random.PRNGKey(0)
    features = 64
    batch = 256
    omega_0 = 30.0

    kx, kp1, kp2 = jax.random.split(key, 3)
    x = jax.random.normal(kx, (batch, features), jnp.float32)
    p1 = init_params(kp1, features, omega_0)
    p2 = init_params(kp2, features, omega_0)

    # Case 1: interior layer (both scalars 0.5), fast-sin path (default).
    out_a = jax.block_until_ready(residual_sine_layer(
        x, *p1, omega_0=omega_0, ave_first=True, ave_second=True))
    ref_a = residual_sine_ref(x, *p1, omega_0=omega_0,
                              ave_first=True, ave_second=True)

    # Case 2: plain layer (weight_2 == 1 path), exact jnp.sin path.
    out_b = jax.block_until_ready(residual_sine_layer(
        x, *p1, omega_0=omega_0, use_fast_sin=False))
    ref_b = residual_sine_ref(x, *p1, omega_0=omega_0)

    # Case 3: two residual blocks fused into a single pallas_call.
    out_c = jax.block_until_ready(residual_sine_stack(
        x, [p1, p2], omega_0=omega_0,
        ave_first=[False, True], ave_second=[True, False]))
    ref_c = residual_sine_ref(x, *p1, omega_0=omega_0,
                              ave_first=False, ave_second=True)
    ref_c = residual_sine_ref(ref_c, *p2, omega_0=omega_0,
                              ave_first=True, ave_second=False)

    assert out_a.shape == (batch, features)
    assert out_b.shape == (batch, features)
    assert out_c.shape == (batch, features)
    err_a = float(jnp.max(jnp.abs(out_a - ref_a)))
    err_b = float(jnp.max(jnp.abs(out_b - ref_b)))
    err_c = float(jnp.max(jnp.abs(out_c - ref_c)))
    # Tolerances: scalar folding reassociates f32 rounding; fast sin adds ~1e-7.
    assert err_a < 2e-4, f"mismatch (interior layer): {err_a}"
    assert err_b < 2e-4, f"mismatch (plain layer, exact sin): {err_b}"
    assert err_c < 5e-4, f"mismatch (fused 2-layer stack): {err_c}"
    print("KERNEL_OK")
</pallas_src>

<mosaic_0001>
module attributes {stable_mosaic.version = 11 : i64} {
  func.func @_stack_kernel(%arg0: i32, %arg1: memref<64x128xf32, #tpu.memory_space<vmem>>, %arg2: memref<1x128x128xf32, #tpu.memory_space<vmem>>, %arg3: memref<1x1x128xf32, #tpu.memory_space<vmem>>, %arg4: memref<1x128x128xf32, #tpu.memory_space<vmem>>, %arg5: memref<1x1x128xf32, #tpu.memory_space<vmem>>, %arg6: memref<64x128xf32, #tpu.memory_space<vmem>>) attributes {dimension_semantics = [#tpu.dimension_semantics<parallel>], iteration_bounds = array<i64: 2>, scalar_prefetch = 0 : i64, scratch_operands = 0 : i64, tpu.core_type = #tpu.core_type<tc>, window_params = [{transform_indices = @transform_0, window_bounds = array<i64: 64, 128>}, {pipeline_mode = #tpu.pipeline_mode<synchronous>, transform_indices = @transform_1, window_bounds = array<i64: 1, 128, 128>}, {pipeline_mode = #tpu.pipeline_mode<synchronous>, transform_indices = @transform_2, window_bounds = array<i64: 1, 1, 128>}, {pipeline_mode = #tpu.pipeline_mode<synchronous>, transform_indices = @transform_3, window_bounds = array<i64: 1, 128, 128>}, {pipeline_mode = #tpu.pipeline_mode<synchronous>, transform_indices = @transform_4, window_bounds = array<i64: 1, 1, 128>}, {transform_indices = @transform_5, window_bounds = array<i64: 64, 128>}]} {
    %c0 = arith.constant 0 : index
    %c0_0 = arith.constant 0 : index
    %0 = vector.load %arg1[%c0, %c0_0] : memref<64x128xf32, #tpu.memory_space<vmem>>, vector<64x128xf32>
    %c0_1 = arith.constant 0 : index
    %c0_2 = arith.constant 0 : index
    %c0_3 = arith.constant 0 : index
    %1 = vector.load %arg2[%c0_1, %c0_2, %c0_3] : memref<1x128x128xf32, #tpu.memory_space<vmem>>, vector<1x128x128xf32>
    %2 = vector.shape_cast %1 : vector<1x128x128xf32> to vector<128x128xf32>
    %cst = arith.constant dense<0.000000e+00> : vector<64x128xf32>
    %3 = tpu.matmul %0, %2, %cst {dimension_numbers = #tpu.dot_dimension_numbers<[1], [0], [0], [1], [0, 0, 1, 1], [], []>} : vector<64x128xf32>, vector<128x128xf32>, vector<64x128xf32> -> vector<64x128xf32>
    %c0_4 = arith.constant 0 : index
    %c0_5 = arith.constant 0 : index
    %c0_6 = arith.constant 0 : index
    %4 = vector.load %arg3[%c0_4, %c0_5, %c0_6] : memref<1x1x128xf32, #tpu.memory_space<vmem>>, vector<1x1x128xf32>
    %5 = vector.shape_cast %4 : vector<1x1x128xf32> to vector<1x128xf32>
    %6 = vector.broadcast %5 : vector<1x128xf32> to vector<64x128xf32>
    %7 = arith.addf %3, %6 : vector<64x128xf32>
    %cst_7 = arith.constant 0.318309873 : f32
    %8 = vector.broadcast %cst_7 : f32 to vector<64x128xf32>
    %9 = arith.mulf %7, %8 : vector<64x128xf32>
    %cst_8 = arith.constant 5.000000e-01 : f32
    %10 = vector.broadcast %cst_8 : f32 to vector<64x128xf32>
    %11 = arith.addf %9, %10 : vector<64x128xf32>
    %12 = math.floor %11 : vector<64x128xf32>
    %cst_9 = arith.constant 3.140625 : f32
    %13 = vector.broadcast %cst_9 : f32 to vector<64x128xf32>
    %14 = arith.mulf %12, %13 : vector<64x128xf32>
    %15 = arith.subf %7, %14 : vector<64x128xf32>
    %cst_10 = arith.constant 9.67653584E-4 : f32
    %16 = vector.broadcast %cst_10 : f32 to vector<64x128xf32>
    %17 = arith.mulf %12, %16 : vector<64x128xf32>
    %18 = arith.subf %15, %17 : vector<64x128xf32>
    %cst_11 = arith.constant 5.000000e-01 : f32
    %19 = vector.broadcast %cst_11 : f32 to vector<64x128xf32>
    %20 = arith.mulf %12, %19 : vector<64x128xf32>
    %21 = math.floor %20 : vector<64x128xf32>
    %cst_12 = arith.constant 2.000000e+00 : f32
    %22 = vector.broadcast %cst_12 : f32 to vector<64x128xf32>
    %23 = arith.mulf %22, %21 : vector<64x128xf32>
    %24 = arith.subf %12, %23 : vector<64x128xf32>
    %cst_13 = arith.constant 2.000000e+00 : f32
    %25 = vector.broadcast %cst_13 : f32 to vector<64x128xf32>
    %26 = arith.mulf %25, %24 : vector<64x128xf32>
    %cst_14 = arith.constant 1.000000e+00 : f32
    %27 = vector.broadcast %cst_14 : f32 to vector<64x128xf32>
    %28 = arith.subf %27, %26 : vector<64x128xf32>
    %29 = arith.mulf %18, %18 : vector<64x128xf32>
    %cst_15 = arith.constant -2.3889859E-8 : f32
    %30 = vector.broadcast %cst_15 : f32 to vector<64x128xf32>
    %31 = arith.mulf %30, %29 : vector<64x128xf32>
    %cst_16 = arith.constant 2.75255616E-6 : f32
    %32 = vector.broadcast %cst_16 : f32 to vector<64x128xf32>
    %33 = arith.addf %31, %32 : vector<64x128xf32>
    %34 = arith.mulf %33, %29 : vector<64x128xf32>
    %cst_17 = arith.constant -1.98408743E-4 : f32
    %35 = vector.broadcast %cst_17 : f32 to vector<64x128xf32>
    %36 = arith.addf %34, %35 : vector<64x128xf32>
    %37 = arith.mulf %36, %29 : vector<64x128xf32>
    %cst_18 = arith.constant 0.00833333097 : f32
    %38 = vector.broadcast %cst_18 : f32 to vector<64x128xf32>
    %39 = arith.addf %37, %38 : vector<64x128xf32>
    %40 = arith.mulf %39, %29 : vector<64x128xf32>
    %cst_19 = arith.constant -0.166666672 : f32
    %41 = vector.broadcast %cst_19 : f32 to vector<64x128xf32>
    %42 = arith.addf %40, %41 : vector<64x128xf32>
    %43 = arith.mulf %18, %29 : vector<64x128xf32>
    %44 = arith.mulf %43, %42 : vector<64x128xf32>
    %45 = arith.addf %18, %44 : vector<64x128xf32>
    %46 = arith.mulf %28, %45 : vector<64x128xf32>
    %c0_20 = arith.constant 0 : index
    %c0_21 = arith.constant 0 : index
    %c0_22 = arith.constant 0 : index
    %47 = vector.load %arg4[%c0_20, %c0_21, %c0_22] : memref<1x128x128xf32, #tpu.memory_space<vmem>>, vector<1x128x128xf32>
    %48 = vector.shape_cast %47 : vector<1x128x128xf32> to vector<128x128xf32>
    %cst_23 = arith.constant dense<0.000000e+00> : vector<64x128xf32>
    %49 = tpu.matmul %46, %48, %cst_23 {dimension_numbers = #tpu.dot_dimension_numbers<[1], [0], [0], [1], [0, 0, 1, 1], [], []>} : vector<64x128xf32>, vector<128x128xf32>, vector<64x128xf32> -> vector<64x128xf32>
    %c0_24 = arith.constant 0 : index
    %c0_25 = arith.constant 0 : index
    %c0_26 = arith.constant 0 : index
    %50 = vector.load %arg5[%c0_24, %c0_25, %c0_26] : memref<1x1x128xf32, #tpu.memory_space<vmem>>, vector<1x1x128xf32>
    %51 = vector.shape_cast %50 : vector<1x1x128xf32> to vector<1x128xf32>
    %52 = vector.broadcast %51 : vector<1x128xf32> to vector<64x128xf32>
    %53 = arith.addf %49, %52 : vector<64x128xf32>
    %cst_27 = arith.constant 0.318309873 : f32
    %54 = vector.broadcast %cst_27 : f32 to vector<64x128xf32>
    %55 = arith.mulf %53, %54 : vector<64x128xf32>
    %cst_28 = arith.constant 5.000000e-01 : f32
    %56 = vector.broadcast %cst_28 : f32 to vector<64x128xf32>
    %57 = arith.addf %55, %56 : vector<64x128xf32>
    %58 = math.floor %57 : vector<64x128xf32>
    %cst_29 = arith.constant 3.140625 : f32
    %59 = vector.broadcast %cst_29 : f32 to vector<64x128xf32>
    %60 = arith.mulf %58, %59 : vector<64x128xf32>
    %61 = arith.subf %53, %60 : vector<64x128xf32>
    %cst_30 = arith.constant 9.67653584E-4 : f32
    %62 = vector.broadcast %cst_30 : f32 to vector<64x128xf32>
    %63 = arith.mulf %58, %62 : vector<64x128xf32>
    %64 = arith.subf %61, %63 : vector<64x128xf32>
    %cst_31 = arith.constant 5.000000e-01 : f32
    %65 = vector.broadcast %cst_31 : f32 to vector<64x128xf32>
    %66 = arith.mulf %58, %65 : vector<64x128xf32>
    %67 = math.floor %66 : vector<64x128xf32>
    %cst_32 = arith.constant 2.000000e+00 : f32
    %68 = vector.broadcast %cst_32 : f32 to vector<64x128xf32>
    %69 = arith.mulf %68, %67 : vector<64x128xf32>
    %70 = arith.subf %58, %69 : vector<64x128xf32>
    %cst_33 = arith.constant 2.000000e+00 : f32
    %71 = vector.broadcast %cst_33 : f32 to vector<64x128xf32>
    %72 = arith.mulf %71, %70 : vector<64x128xf32>
    %cst_34 = arith.constant 1.000000e+00 : f32
    %73 = vector.broadcast %cst_34 : f32 to vector<64x128xf32>
    %74 = arith.subf %73, %72 : vector<64x128xf32>
    %75 = arith.mulf %64, %64 : vector<64x128xf32>
    %cst_35 = arith.constant -2.3889859E-8 : f32
    %76 = vector.broadcast %cst_35 : f32 to vector<64x128xf32>
    %77 = arith.mulf %76, %75 : vector<64x128xf32>
    %cst_36 = arith.constant 2.75255616E-6 : f32
    %78 = vector.broadcast %cst_36 : f32 to vector<64x128xf32>
    %79 = arith.addf %77, %78 : vector<64x128xf32>
    %80 = arith.mulf %79, %75 : vector<64x128xf32>
    %cst_37 = arith.constant -1.98408743E-4 : f32
    %81 = vector.broadcast %cst_37 : f32 to vector<64x128xf32>
    %82 = arith.addf %80, %81 : vector<64x128xf32>
    %83 = arith.mulf %82, %75 : vector<64x128xf32>
    %cst_38 = arith.constant 0.00833333097 : f32
    %84 = vector.broadcast %cst_38 : f32 to vector<64x128xf32>
    %85 = arith.addf %83, %84 : vector<64x128xf32>
    %86 = arith.mulf %85, %75 : vector<64x128xf32>
    %cst_39 = arith.constant -0.166666672 : f32
    %87 = vector.broadcast %cst_39 : f32 to vector<64x128xf32>
    %88 = arith.addf %86, %87 : vector<64x128xf32>
    %89 = arith.mulf %64, %75 : vector<64x128xf32>
    %90 = arith.mulf %89, %88 : vector<64x128xf32>
    %91 = arith.addf %64, %90 : vector<64x128xf32>
    %92 = arith.mulf %74, %91 : vector<64x128xf32>
    %93 = arith.addf %0, %92 : vector<64x128xf32>
    %cst_40 = arith.constant 5.000000e-01 : f32
    %94 = vector.broadcast %cst_40 : f32 to vector<64x128xf32>
    %95 = arith.mulf %94, %93 : vector<64x128xf32>
    %c0_41 = arith.constant 0 : index
    %c0_42 = arith.constant 0 : index
    %96 = vector.load %arg6[%c0_41, %c0_42] : memref<64x128xf32, #tpu.memory_space<vmem>>, vector<64x128xf32>
    tpu.vector_store %arg6[%c0_41, %c0_42], %95 {strides = array<i32>} : memref<64x128xf32, #tpu.memory_space<vmem>>, vector<64x128xf32>,
    return
  }
  func.func @transform_0(%arg0: i32) -> (i32, i32) {
    %c0_i32 = arith.constant 0 : i32
    %c0_i32_0 = arith.constant 0 : i32
    return %arg0, %c0_i32 : i32, i32
  }
  func.func @transform_1(%arg0: i32) -> (i32, i32, i32) {
    %c0_i32 = arith.constant 0 : i32
    %c0_i32_0 = arith.constant 0 : i32
    %c0_i32_1 = arith.constant 0 : i32
    %c0_i32_2 = arith.constant 0 : i32
    return %c0_i32, %c0_i32_0, %c0_i32_1 : i32, i32, i32
  }
  func.func @transform_2(%arg0: i32) -> (i32, i32, i32) {
    %c0_i32 = arith.constant 0 : i32
    %c0_i32_0 = arith.constant 0 : i32
    %c0_i32_1 = arith.constant 0 : i32
    %c0_i32_2 = arith.constant 0 : i32
    return %c0_i32, %c0_i32_0, %c0_i32_1 : i32, i32, i32
  }
  func.func @transform_3(%arg0: i32) -> (i32, i32, i32) {
    %c0_i32 = arith.constant 0 : i32
    %c0_i32_0 = arith.constant 0 : i32
    %c0_i32_1 = arith.constant 0 : i32
    %c0_i32_2 = arith.constant 0 : i32
    return %c0_i32, %c0_i32_0, %c0_i32_1 : i32, i32, i32
  }
  func.func @transform_4(%arg0: i32) -> (i32, i32, i32) {
    %c0_i32 = arith.constant 0 : i32
    %c0_i32_0 = arith.constant 0 : i32
    %c0_i32_1 = arith.constant 0 : i32
    %c0_i32_2 = arith.constant 0 : i32
    return %c0_i32, %c0_i32_0, %c0_i32_1 : i32, i32, i32
  }
  func.func @transform_5(%arg0: i32) -> (i32, i32) {
    %c0_i32 = arith.constant 0 : i32
    %c0_i32_0 = arith.constant 0 : i32
    return %arg0, %c0_i32 : i32, i32
  }
}

</mosaic_0001>

<llo_original>
// kernel: tpu_custom_call.1
$region0: #{tpu_custom_call.1}
  #allocation0 [shape = 'u32[]', space=smem, size = 0x4, offset = 0x4, fixed_abs, tag = 'smem constant byte address 0x4 - core index']
  #allocation1 [shape = 'u32[144,128]{1,0:T(1,128)}', space=vmem, size = 0x12000, scoped, tag = 'internal scratch']
  %s0 = inlined_call_operand.hbm [shape: f32[128,128], index: 0, kind: input, shape index: {}]
  %s1 = inlined_call_operand.hbm [shape: f32[1,128,128], index: 1, kind: input, shape index: {}]
  %s2 = inlined_call_operand.vmem [shape: f32[1,1,128], index: 2, kind: input, shape index: {}]
  %s3 = inlined_call_operand.hbm [shape: f32[1,128,128], index: 3, kind: input, shape index: {}]
  %s4 = inlined_call_operand.vmem [shape: f32[1,1,128], index: 4, kind: input, shape index: {}]
  %s5 = inlined_call_operand.hbm [shape: f32[128,128], index: 5, kind: output, shape index: {}]
  %s6 = sld [smem:[#allocation0]]
  $region65: #{tpu_custom_call.1} parent=0
    _
  %s8 = ssub.s32 1, %s6
  %s9 = scalar_select 0, %s8, %s6
  $region1: #{tpu_custom_call.1} parent=0
    #allocation2 [shape = 'u8[65536]{0}', space=vmem, size = 0x10000, scoped, tag = 'input window, operand 0']
    #allocation3 [shape = 's32[2]{0}', space=sflag, size = 0x8, scoped, tag = 'scoped memory for tpu_custom_call.1']
    #allocation4 [shape = 's32[2]{0}', space=sflag, size = 0x8, scoped, tag = 'scoped memory for tpu_custom_call.1']
    #allocation5 [shape = 'u8[65536]{0}', space=vmem, size = 0x10000, scoped, tag = 'input window, operand 1, single buffered']
    #allocation6 [shape = 's32[1]{0}', space=sflag, size = 0x4, scoped, tag = 'scoped memory for tpu_custom_call.1']
    #allocation7 [shape = 'u8[65536]{0}', space=vmem, size = 0x10000, scoped, tag = 'input window, operand 3, single buffered']
    #allocation8 [shape = 'u8[65536]{0}', space=vmem, size = 0x10000, scoped, tag = 'output window, operand 0']
    %10 = vsyncpa [#allocation3], 0
    %s11 = scalar_lea.sflag [#allocation3], 1
    %12 = vsyncpa %s11, 0
    %13 = vsyncpa [#allocation6], 0
    %14 = vsyncpa [#allocation4], 0
    %s15 = scalar_lea.sflag [#allocation4], 1
    %16 = vsyncpa %s15, 0
    loop: start=0, step=1, limit=4
    $region2: #{tpu_custom_call.1} parent=1 // loop_pre_header
      _
    $region3: #{tpu_custom_call.1} parent=1 // loop_header
      %s18 = sphi 0, %s22
      %p19 = scmp.ge.s32.totalorder %s18, 4
      %s28 = sphi 0, %s30
      %s31 = sphi 0, %s28
      %s32 = sphi 0, %s31
      %s48 = sphi 0, %s32
      %s52 = sphi 0, %s52
      %s54 = sphi 0, %s52
      %s55 = sphi 0, %s54
      %s69 = sphi 0, %s55
      %s73 = sphi 0, %s73
      %s75 = sphi 0, %s73
      %s76 = sphi 0, %s75
      %s90 = sphi 0, %s76
      %s94 = sphi 0, %s94
      %s96 = sphi 0, %s94
      %s97 = sphi 0, %s96
      %s111 = sphi 0, %s97
      %s115 = sphi 0, %s115
      %s117 = sphi 0, %s115
      %s118 = sphi 0, %s117
      %s132 = sphi 0, %s118
      %s138 = sphi 0, %s140
      %s141 = sphi 0, %s138
      %s142 = sphi 0, %s141
      %s158 = sphi 0, %s142
    $region4: #{tpu_custom_call.1} parent=1 // loop_header_branch
      %21 = sbr.rel (%p19) target = $region8
    $region5: #{tpu_custom_call.1} parent=1 // loop_body
      %s23 = ssub.s32 %s18, 1
      %s24 = ssub.s32 %s18, 2
      %s25 = sadd.s32 %s18, 1
      %s26 = ssub.s32 %s18, %s25
      %p27 = scmp.eq.s32.totalorder %s26, 0
      %s29 = sadd.s32 %s28, 1
      %s30 = scalar_select %p27, %s28, %s29
      %p33 = pneg %p27
      %p34 = scmp.eq.s32.totalorder %s18, 1
      %p35 = por %p33, %p34
      %p36 = scmp.ne.s32.totalorder %s28, %s31
      %p37 = scmp.eq.s32.totalorder %s18, 0
      %p38 = por %p36, %p37
      %p39 = scmp.ne.s32.totalorder %s28, %s31
      %p40 = scmp.eq.s32.totalorder %s23, 1
      %p41 = por %p39, %p40
      %p42 = scmp.ne.s32.totalorder %s31, %s32
      %p43 = scmp.eq.s32.totalorder %s23, 0
      %p44 = por %p42, %p43
      %p45 = scmp.ne.s32.totalorder %s31, %s32
      %p46 = scmp.eq.s32.totalorder %s24, 1
      %p47 = por %p45, %p46
      %p49 = scmp.ne.s32.totalorder %s32, %s48
      %p50 = scmp.eq.s32.totalorder %s24, 0
      %p51 = por %p49, %p50
      %s53 = sadd.s32 %s52, 1
      %p56 = scmp.eq.s32.totalorder %s18, 1
      %p57 = scmp.ne.s32.totalorder %s52, %s54
      %p58 = scmp.eq.s32.totalorder %s18, 0
      %p59 = por %p57, %p58
      %p60 = scmp.ne.s32.totalorder %s52, %s54
      %p61 = scmp.eq.s32.totalorder %s23, 1
      %p62 = por %p60, %p61
      %p63 = scmp.ne.s32.totalorder %s54, %s55
      %p64 = scmp.eq.s32.totalorder %s23, 0
      %p65 = por %p63, %p64
      %p66 = scmp.ne.s32.totalorder %s54, %s55
      %p67 = scmp.eq.s32.totalorder %s24, 1
      %p68 = por %p66, %p67
      %p70 = scmp.ne.s32.totalorder %s55, %s69
      %p71 = scmp.eq.s32.totalorder %s24, 0
      %p72 = por %p70, %p71
      %s74 = sadd.s32 %s73, 1
      %p77 = scmp.eq.s32.totalorder %s18, 1
      %p78 = scmp.ne.s32.totalorder %s73, %s75
      %p79 = scmp.eq.s32.totalorder %s18, 0
      %p80 = por %p78, %p79
      %p81 = scmp.ne.s32.totalorder %s73, %s75
      %p82 = scmp.eq.s32.totalorder %s23, 1
      %p83 = por %p81, %p82
      %p84 = scmp.ne.s32.totalorder %s75, %s76
      %p85 = scmp.eq.s32.totalorder %s23, 0
      %p86 = por %p84, %p85
      %p87 = scmp.ne.s32.totalorder %s75, %s76
      %p88 = scmp.eq.s32.totalorder %s24, 1
      %p89 = por %p87, %p88
      %p91 = scmp.ne.s32.totalorder %s76, %s90
      %p92 = scmp.eq.s32.totalorder %s24, 0
      %p93 = por %p91, %p92
      %s95 = sadd.s32 %s94, 1
      %p98 = scmp.eq.s32.totalorder %s18, 1
      %p99 = scmp.ne.s32.totalorder %s94, %s96
      %p100 = scmp.eq.s32.totalorder %s18, 0
      %p101 = por %p99, %p100
      %p102 = scmp.ne.s32.totalorder %s94, %s96
      %p103 = scmp.eq.s32.totalorder %s23, 1
      %p104 = por %p102, %p103
      %p105 = scmp.ne.s32.totalorder %s96, %s97
      %p106 = scmp.eq.s32.totalorder %s23, 0
      %p107 = por %p105, %p106
      %p108 = scmp.ne.s32.totalorder %s96, %s97
      %p109 = scmp.eq.s32.totalorder %s24, 1
      %p110 = por %p108, %p109
      %p112 = scmp.ne.s32.totalorder %s97, %s111
      %p113 = scmp.eq.s32.totalorder %s24, 0
      %p114 = por %p112, %p113
      %s116 = sadd.s32 %s115, 1
      %p119 = scmp.eq.s32.totalorder %s18, 1
      %p120 = scmp.ne.s32.totalorder %s115, %s117
      %p121 = scmp.eq.s32.totalorder %s18, 0
      %p122 = por %p120, %p121
      %p123 = scmp.ne.s32.totalorder %s115, %s117
      %p124 = scmp.eq.s32.totalorder %s23, 1
      %p125 = por %p123, %p124
      %p126 = scmp.ne.s32.totalorder %s117, %s118
      %p127 = scmp.eq.s32.totalorder %s23, 0
      %p128 = por %p126, %p127
      %p129 = scmp.ne.s32.totalorder %s117, %s118
      %p130 = scmp.eq.s32.totalorder %s24, 1
      %p131 = por %p129, %p130
      %p133 = scmp.ne.s32.totalorder %s118, %s132
      %p134 = scmp.eq.s32.totalorder %s24, 0
      %p135 = por %p133, %p134
      %s136 = ssub.s32 %s18, %s25
      %p137 = scmp.eq.s32.totalorder %s136, 0
      %s139 = sadd.s32 %s138, 1
      %s140 = scalar_select %p137, %s138, %s139
      %p143 = pneg %p137
      %p144 = scmp.eq.s32.totalorder %s18, 1
      %p145 = por %p143, %p144
      %p146 = scmp.ne.s32.totalorder %s138, %s141
      %p147 = scmp.eq.s32.totalorder %s18, 0
      %p148 = por %p146, %p147
      %p149 = scmp.ne.s32.totalorder %s138, %s141
      %p150 = scmp.eq.s32.totalorder %s23, 1
      %p151 = por %p149, %p150
      %p152 = scmp.ne.s32.totalorder %s141, %s142
      %p153 = scmp.eq.s32.totalorder %s23, 0
      %p154 = por %p152, %p153
      %p155 = scmp.ne.s32.totalorder %s141, %s142
      %p156 = scmp.eq.s32.totalorder %s24, 1
      %p157 = por %p155, %p156
      %p159 = scmp.ne.s32.totalorder %s142, %s158
      %p160 = scmp.eq.s32.totalorder %s24, 0
      %p161 = por %p159, %p160
      %p162 = scmp.le.s32.totalorder 1, %s18
      %p163 = scmp.lt.s32.totalorder %s18, 3
      %p164 = pnand %p162, %p163
      %p165 = pneg %p164
      // Predicated region
      $region9: #{tpu_custom_call.1} parent=5 // pred_check
        _
      $region10: #{tpu_custom_call.1} parent=5 // pred_check_branch
        %167 = sbr.rel (%p164) target = $region12
      $region11: #{tpu_custom_call.1} parent=5 // pred_region
        %s168 = ssub.s32 %s18, 1
        // Predicated region
        $region13: #{tpu_custom_call.1} parent=11 // pred_check
          %p169 = pneg %p65
        $region14: #{tpu_custom_call.1} parent=11 // pred_check_branch
          %171 = sbr.rel (%p169) target = $region16
        $region15: #{tpu_custom_call.1} parent=11 // pred_region
          %s173 = ssub.s32 2048, 2048
          %174 = vsyncadd [#allocation6], %s173
          %s175 = sshll.u32 [#allocation5], 4
          %s176 = int_to_ptr.vmem [resolvable:$true] %s175
          %181 = dma.hbm_to_vmem [thread:$0]  %s1, 2048, %s176, [#allocation6], 128, 128, 8
        $region16: #{tpu_custom_call.1} parent=11 // pred_fallthru
          _
        // Predicated region
        $region17: #{tpu_custom_call.1} parent=11 // pred_check
          %p182 = pneg %p86
        $region18: #{tpu_custom_call.1} parent=11 // pred_check_branch
          %184 = sbr.rel (%p182) target = $region20
        $region19: #{tpu_custom_call.1} parent=11 // pred_region
          _
        $region20: #{tpu_custom_call.1} parent=11 // pred_fallthru
          _
        // Predicated region
        $region21: #{tpu_custom_call.1} parent=11 // pred_check
          %p185 = pneg %p107
        $region22: #{tpu_custom_call.1} parent=11 // pred_check_branch
          %187 = sbr.rel (%p185) target = $region24
        $region23: #{tpu_custom_call.1} parent=11 // pred_region
          %s189 = ssub.s32 2048, 2048
          %190 = vsyncadd [#allocation6], %s189
          %s191 = sshll.u32 [#allocation7], 4
          %s192 = int_to_ptr.vmem [resolvable:$true] %s191
          %197 = dma.hbm_to_vmem [thread:$0]  %s3, 2048, %s192, [#allocation6], 128, 128, 8
        $region24: #{tpu_custom_call.1} parent=11 // pred_fallthru
          _
        // Predicated region
        $region25: #{tpu_custom_call.1} parent=11 // pred_check
          %p198 = pneg %p128
        $region26: #{tpu_custom_call.1} parent=11 // pred_check_branch
          %200 = sbr.rel (%p198) target = $region28
        $region27: #{tpu_custom_call.1} parent=11 // pred_region
          _
        $region28: #{tpu_custom_call.1} parent=11 // pred_fallthru
          _
      $region12: #{tpu_custom_call.1} parent=5 // pred_fallthru
        _
      %p201 = scmp.lt.s32.totalorder %s18, 2
      // Predicated region
      $region29: #{tpu_custom_call.1} parent=5 // pred_check
        %p202 = pneg %p201
      $region30: #{tpu_custom_call.1} parent=5 // pred_check_branch
        %204 = sbr.rel (%p202) target = $region32
      $region31: #{tpu_custom_call.1} parent=5 // pred_region
        // Predicated region
        $region33: #{tpu_custom_call.1} parent=31 // pred_check
          %p205 = pneg %p38
        $region34: #{tpu_custom_call.1} parent=31 // pred_check_branch
          %207 = sbr.rel (%p205) target = $region36
        $region35: #{tpu_custom_call.1} parent=31 // pred_region
          %s208 = sand.u32 %s28, 1
          %s209 = scalar_lea.sflag [#allocation3], %s208
          %s210 = sand.u32 %s28, 1
          %s211 = smul.addr %s210, 64
          %s212 = scalar_lea.vmem [#allocation2], %s211
          %s213 = smul.u32 8, %s18
          %s215 = ssub.s32 1024, 1024
          %216 = vsyncadd %s209, %s215
          %s217 = smul.addr %s213, 128
          %s218 = scalar_lea.hbm %s0, %s217
          %s219 = sshll.u32 %s212, 4
          %s220 = int_to_ptr.vmem [resolvable:$true] %s219
          %225 = dma.hbm_to_vmem [thread:$0]  %s218, 1024, %s220, %s209, 128, 128, 8
        $region36: #{tpu_custom_call.1} parent=31 // pred_fallthru
          _
      $region32: #{tpu_custom_call.1} parent=5 // pred_fallthru
        _
      %p226 = scmp.le.s32.totalorder 1, %s18
      %p227 = scmp.lt.s32.totalorder %s18, 3
      %p228 = pnand %p226, %p227
      %p229 = pneg %p228
      // Predicated region
      $region37: #{tpu_custom_call.1} parent=5 // pred_check
        _
      $region38: #{tpu_custom_call.1} parent=5 // pred_check_branch
        %231 = sbr.rel (%p228) target = $region40
      $region39: #{tpu_custom_call.1} parent=5 // pred_region
        %s232 = ssub.s32 %s18, 1
        %s233 = sand.u32 %s31, 1
        %s234 = scalar_lea.sflag [#allocation3], %s233
        %s235 = sand.u32 %s31, 1
        %s236 = smul.addr %s235, 64
        %s237 = scalar_lea.vmem [#allocation2], %s236
        // Predicated region
        $region41: #{tpu_custom_call.1} parent=39 // pred_check
          %p238 = pneg %p44
        $region42: #{tpu_custom_call.1} parent=39 // pred_check_branch
          %240 = sbr.rel (%p238) target = $region44
        $region43: #{tpu_custom_call.1} parent=39 // pred_region
          %241 = dma.done %s234, 1024
        $region44: #{tpu_custom_call.1} parent=39 // pred_fallthru
          _
        // Predicated region
        $region45: #{tpu_custom_call.1} parent=39 // pred_check
          %p242 = pneg %p65
        $region46: #{tpu_custom_call.1} parent=39 // pred_check_branch
          %244 = sbr.rel (%p242) target = $region48
        $region47: #{tpu_custom_call.1} parent=39 // pred_region
          %245 = dma.done [#allocation6], 2048
        $region48: #{tpu_custom_call.1} parent=39 // pred_fallthru
          _
        // Predicated region
        $region49: #{tpu_custom_call.1} parent=39 // pred_check
          %p246 = pneg %p107
        $region50: #{tpu_custom_call.1} parent=39 // pred_check_branch
          %248 = sbr.rel (%p246) target = $region52
        $region51: #{tpu_custom_call.1} parent=39 // pred_region
          %249 = dma.done [#allocation6], 2048
        $region52: #{tpu_custom_call.1} parent=39 // pred_fallthru
          _
        %s250 = sand.u32 %s31, 1
        %s251 = scalar_lea.sflag [#allocation3], %s250
        %s252 = sand.u32 %s31, 1
        %s253 = smul.addr %s252, 64
        %s254 = scalar_lea.vmem [#allocation2], %s253
        %p255 = pneg %p44
        %p256 = pneg %p41
        %p257 = pneg %p65
        %p258 = pneg %p62
        %p259 = pneg %p86
        %p260 = pneg %p83
        %p261 = pneg %p107
        %p262 = pneg %p104
        %p263 = pneg %p128
        %p264 = pneg %p125
        %p265 = pneg %p154
        %p266 = pneg %p151
        %s267 = sand.u32 %s141, 1
        %s268 = scalar_lea.sflag [#allocation4], %s267
        %s269 = sand.u32 %s141, 1
        %s270 = smul.addr %s269, 64
        %s271 = scalar_lea.vmem [#allocation8], %s270
        %s272 = smul.u32 8, %s23
        %s273 = smul.u32 8, %s23
        %v274 = vld [vmem:[%s237] sm:$0xff]
        %v275 = vld [vmem:[%s237 + $0x8] sm:$0xff]
        %v276 = vld [vmem:[%s237 + $0x10] sm:$0xff]
        %v277 = vld [vmem:[%s237 + $0x18] sm:$0xff]
        %v278 = vld [vmem:[%s237 + $0x20] sm:$0xff]
        %v279 = vld [vmem:[%s237 + $0x28] sm:$0xff]
        %v280 = vld [vmem:[%s237 + $0x30] sm:$0xff]
        %v281 = vld [vmem:[%s237 + $0x38] sm:$0xff]
        %v282 = vld [vmem:[#allocation5] sm:$0xff]
        %v283 = vld [vmem:[#allocation5 + $0x8] sm:$0xff]
        %v284 = vld [vmem:[#allocation5 + $0x10] sm:$0xff]
        %v285 = vld [vmem:[#allocation5 + $0x18] sm:$0xff]
        %v286 = vld [vmem:[#allocation5 + $0x20] sm:$0xff]
        %v287 = vld [vmem:[#allocation5 + $0x28] sm:$0xff]
        %v288 = vld [vmem:[#allocation5 + $0x30] sm:$0xff]
        %v289 = vld [vmem:[#allocation5 + $0x38] sm:$0xff]
        %v290 = vld [vmem:[#allocation5 + $0x40] sm:$0xff]
        %v291 = vld [vmem:[#allocation5 + $0x48] sm:$0xff]
        %v292 = vld [vmem:[#allocation5 + $0x50] sm:$0xff]
        %v293 = vld [vmem:[#allocation5 + $0x58] sm:$0xff]
        %v294 = vld [vmem:[#allocation5 + $0x60] sm:$0xff]
        %v295 = vld [vmem:[#allocation5 + $0x68] sm:$0xff]
        %v296 = vld [vmem:[#allocation5 + $0x70] sm:$0xff]
        %v297 = vld [vmem:[#allocation5 + $0x78] sm:$0xff]
        %v298 = vld [vmem:[%s2] sm:$0x1]
        %v300 = vlaneseq
        %v301 = vshrl.u32 %v300, 7
        %v302 = vsub.s32 0, %v301
        %v303 = vrot.slane %v298, %v302
        %305 = vmatprep.subr.mxu0 0.0
        %306 = vmatpush1.msra.mxu0 %v297
        %307 = vmatprep.subr.mxu0 0.0
        %308 = vmatpush1.msra.mxu0 %v296
        %309 = vmatprep.subr.mxu0 0.0
        %310 = vmatpush1.msra.mxu0 %v295
        %311 = vmatprep.subr.mxu0 0.0
        %312 = vmatpush1.msra.mxu0 %v294
        %313 = vmatprep.subr.mxu0 0.0
        %314 = vmatpush1.msra.mxu0 %v293
        %315 = vmatprep.subr.mxu0 0.0
        %316 = vmatpush1.msra.mxu0 %v292
        %317 = vmatprep.subr.mxu0 0.0
        %318 = vmatpush1.msra.mxu0 %v291
        %319 = vmatprep.subr.mxu0 0.0
        %320 = vmatpush1.msra.mxu0 %v290
        %321 = vmatprep.subr.mxu0 0.0
        %322 = vmatpush1.msra.mxu0 %v289
        %323 = vmatprep.subr.mxu0 0.0
        %324 = vmatpush1.msra.mxu0 %v288
        %325 = vmatprep.subr.mxu0 0.0
        %326 = vmatpush1.msra.mxu0 %v287
        %327 = vmatprep.subr.mxu0 0.0
        %328 = vmatpush1.msra.mxu0 %v286
        %329 = vmatprep.subr.mxu0 0.0
        %330 = vmatpush1.msra.mxu0 %v285
        %331 = vmatprep.subr.mxu0 0.0
        %332 = vmatpush1.msra.mxu0 %v284
        %333 = vmatprep.subr.mxu0 0.0
        %334 = vmatpush1.msra.mxu0 %v283
        %335 = vmatprep.subr.mxu0 0.0
        %336 = vmatpush1.msra.mxu0 %v282
        %337 = vmatprep.subr.mxu0 0.0
        %338 = vmatpush2.msra.mxu0 0.0
        %339 = vmatprep.subr.mxu0 0.0
        %340 = vmatpush2.msra.mxu0 0.0
        %341 = vmatprep.subr.mxu0 0.0
        %342 = vmatpush2.msra.mxu0 0.0
        %343 = vmatprep.subr.mxu0 0.0
        %344 = vmatpush2.msra.mxu0 0.0
        %345 = vmatprep.subr.mxu0 0.0
        %346 = vmatpush2.msra.mxu0 0.0
        %347 = vmatprep.subr.mxu0 0.0
        %348 = vmatpush2.msra.mxu0 0.0
        %349 = vmatprep.subr.mxu0 0.0
        %350 = vmatpush2.msra.mxu0 0.0
        %351 = vmatprep.subr.mxu0 0.0
        %352 = vmatpush2.msra.mxu0 0.0
        %353 = vmatprep.subr.mxu0 0.0
        %354 = vmatpush2.msra.mxu0 0.0
        %355 = vmatprep.subr.mxu0 0.0
        %356 = vmatpush2.msra.mxu0 0.0
        %357 = vmatprep.subr.mxu0 0.0
        %358 = vmatpush2.msra.mxu0 0.0
        %359 = vmatprep.subr.mxu0 0.0
        %360 = vmatpush2.msra.mxu0 0.0
        %361 = vmatprep.subr.mxu0 0.0
        %362 = vmatpush2.msra.mxu0 0.0
        %363 = vmatprep.subr.mxu0 0.0
        %364 = vmatpush2.msra.mxu0 0.0
        %365 = vmatprep.subr.mxu0 0.0
        %366 = vmatpush2.msra.mxu0 0.0
        %367 = vmatprep.subr.mxu0 0.0
        %368 = vmatpush2.msra.mxu0 0.0
        %369 = vmatprep.mubr.f32.mxu0 0.0
        %370 = vmatmul.mubr.f32.gmra.mxu0 %v274
        %v371 = vpop.f32.mrf.mxu0
        %v372 = vadd.f32 %v303, %v371
        %v373 = vpop.f32.mrf.mxu0
        %374 = vmatprep.mubr.f32.mxu0 0.0
        %375 = vmatmul.mubr.f32.gmra.mxu0 %v275
        %v376 = vpop.f32.mrf.mxu0
        %v377 = vadd.f32 %v303, %v376
        %v378 = vpop.f32.mrf.mxu0
        %379 = vmatprep.mubr.f32.mxu0 0.0
        %380 = vmatmul.mubr.f32.gmra.mxu0 %v276
        %v381 = vpop.f32.mrf.mxu0
        %v382 = vadd.f32 %v303, %v381
        %v383 = vpop.f32.mrf.mxu0
        %384 = vmatprep.mubr.f32.mxu0 0.0
        %385 = vmatmul.mubr.f32.gmra.mxu0 %v277
        %v386 = vpop.f32.mrf.mxu0
        %v387 = vadd.f32 %v303, %v386
        %v388 = vpop.f32.mrf.mxu0
        %389 = vmatprep.mubr.f32.mxu0 0.0
        %390 = vmatmul.mubr.f32.gmra.mxu0 %v278
        %v391 = vpop.f32.mrf.mxu0
        %v392 = vadd.f32 %v303, %v391
        %v393 = vpop.f32.mrf.mxu0
        %394 = vmatprep.mubr.f32.mxu0 0.0
        %395 = vmatmul.mubr.f32.gmra.mxu0 %v279
        %v396 = vpop.f32.mrf.mxu0
        %v397 = vadd.f32 %v303, %v396
        %v398 = vpop.f32.mrf.mxu0
        %399 = vmatprep.mubr.f32.mxu0 0.0
        %400 = vmatmul.mubr.f32.gmra.mxu0 %v280
        %v401 = vpop.f32.mrf.mxu0
        %v402 = vadd.f32 %v303, %v401
        %v403 = vpop.f32.mrf.mxu0
        %404 = vmatprep.mubr.f32.mxu0 0.0
        %405 = vmatmul.mubr.f32.gmra.mxu0 %v281
        %v406 = vpop.f32.mrf.mxu0
        %v407 = vadd.f32 %v303, %v406
        %v408 = vpop.f32.mrf.mxu0
        %409 = vdwg.mxu0
        %v410 = vmul.f32 %v372, 0.31830987
        %v411 = vmul.f32 %v377, 0.31830987
        %v412 = vmul.f32 %v382, 0.31830987
        %v413 = vmul.f32 %v387, 0.31830987
        %v414 = vmul.f32 %v392, 0.31830987
        %v415 = vmul.f32 %v397, 0.31830987
        %v416 = vmul.f32 %v402, 0.31830987
        %v417 = vmul.f32 %v407, 0.31830987
        %v418 = vadd.f32 %v410, 0.5
        %v419 = vadd.f32 %v411, 0.5
        %v420 = vadd.f32 %v412, 0.5
        %v421 = vadd.f32 %v413, 0.5
        %v422 = vadd.f32 %v414, 0.5
        %v423 = vadd.f32 %v415, 0.5
        %v424 = vadd.f32 %v416, 0.5
        %v425 = vadd.f32 %v417, 0.5
        %v426 = vfloor.f32 %v418
        %v427 = vfloor.f32 %v419
        %v428 = vfloor.f32 %v420
        %v429 = vfloor.f32 %v421
        %v430 = vfloor.f32 %v422
        %v431 = vfloor.f32 %v423
        %v432 = vfloor.f32 %v424
        %v433 = vfloor.f32 %v425
        %v434 = vmul.f32 %v426, 3.140625
        %v435 = vmul.f32 %v427, 3.140625
        %v436 = vmul.f32 %v428, 3.140625
        %v437 = vmul.f32 %v429, 3.140625
        %v438 = vmul.f32 %v430, 3.140625
        %v439 = vmul.f32 %v431, 3.140625
        %v440 = vmul.f32 %v432, 3.140625
        %v441 = vmul.f32 %v433, 3.140625
        %v442 = vsub.f32 %v372, %v434
        %v443 = vsub.f32 %v377, %v435
        %v444 = vsub.f32 %v382, %v436
        %v445 = vsub.f32 %v387, %v437
        %v446 = vsub.f32 %v392, %v438
        %v447 = vsub.f32 %v397, %v439
        %v448 = vsub.f32 %v402, %v440
        %v449 = vsub.f32 %v407, %v441
        %v450 = vmul.f32 %v426, 0.0009676536
        %v451 = vmul.f32 %v427, 0.0009676536
        %v452 = vmul.f32 %v428, 0.0009676536
        %v453 = vmul.f32 %v429, 0.0009676536
        %v454 = vmul.f32 %v430, 0.0009676536
        %v455 = vmul.f32 %v431, 0.0009676536
        %v456 = vmul.f32 %v432, 0.0009676536
        %v457 = vmul.f32 %v433, 0.0009676536
        %v458 = vsub.f32 %v442, %v450
        %v459 = vsub.f32 %v443, %v451
        %v460 = vsub.f32 %v444, %v452
        %v461 = vsub.f32 %v445, %v453
        %v462 = vsub.f32 %v446, %v454
        %v463 = vsub.f32 %v447, %v455
        %v464 = vsub.f32 %v448, %v456
        %v465 = vsub.f32 %v449, %v457
        %v466 = vmul.f32 %v426, 0.5
        %v467 = vmul.f32 %v427, 0.5
        %v468 = vmul.f32 %v428, 0.5
        %v469 = vmul.f32 %v429, 0.5
        %v470 = vmul.f32 %v430, 0.5
        %v471 = vmul.f32 %v431, 0.5
        %v472 = vmul.f32 %v432, 0.5
        %v473 = vmul.f32 %v433, 0.5
        %v474 = vfloor.f32 %v466
        %v475 = vfloor.f32 %v467
        %v476 = vfloor.f32 %v468
        %v477 = vfloor.f32 %v469
        %v478 = vfloor.f32 %v470
        %v479 = vfloor.f32 %v471
        %v480 = vfloor.f32 %v472
        %v481 = vfloor.f32 %v473
        %v482 = vmul.f32 %v474, 2.0
        %v483 = vmul.f32 %v475, 2.0
        %v484 = vmul.f32 %v476, 2.0
        %v485 = vmul.f32 %v477, 2.0
        %v486 = vmul.f32 %v478, 2.0
        %v487 = vmul.f32 %v479, 2.0
        %v488 = vmul.f32 %v480, 2.0
        %v489 = vmul.f32 %v481, 2.0
        %v490 = vsub.f32 %v426, %v482
        %v491 = vsub.f32 %v427, %v483
        %v492 = vsub.f32 %v428, %v484
        %v493 = vsub.f32 %v429, %v485
        %v494 = vsub.f32 %v430, %v486
        %v495 = vsub.f32 %v431, %v487
        %v496 = vsub.f32 %v432, %v488
        %v497 = vsub.f32 %v433, %v489
        %v498 = vmul.f32 %v490, 2.0
        %v499 = vmul.f32 %v491, 2.0
        %v500 = vmul.f32 %v492, 2.0
        %v501 = vmul.f32 %v493, 2.0
        %v502 = vmul.f32 %v494, 2.0
        %v503 = vmul.f32 %v495, 2.0
        %v504 = vmul.f32 %v496, 2.0
        %v505 = vmul.f32 %v497, 2.0
        %v506 = vsub.f32 1.0, %v498
        %v507 = vsub.f32 1.0, %v499
        %v508 = vsub.f32 1.0, %v500
        %v509 = vsub.f32 1.0, %v501
        %v510 = vsub.f32 1.0, %v502
        %v511 = vsub.f32 1.0, %v503
        %v512 = vsub.f32 1.0, %v504
        %v513 = vsub.f32 1.0, %v505
        %v514 = vmul.f32 %v458, %v458
        %v515 = vmul.f32 %v459, %v459
        %v516 = vmul.f32 %v460, %v460
        %v517 = vmul.f32 %v461, %v461
        %v518 = vmul.f32 %v462, %v462
        %v519 = vmul.f32 %v463, %v463
        %v520 = vmul.f32 %v464, %v464
        %v521 = vmul.f32 %v465, %v465
        %v522 = vmul.f32 %v514, -2.3889859e-08
        %v523 = vmul.f32 %v515, -2.3889859e-08
        %v524 = vmul.f32 %v516, -2.3889859e-08
        %v525 = vmul.f32 %v517, -2.3889859e-08
        %v526 = vmul.f32 %v518, -2.3889859e-08
        %v527 = vmul.f32 %v519, -2.3889859e-08
        %v528 = vmul.f32 %v520, -2.3889859e-08
        %v529 = vmul.f32 %v521, -2.3889859e-08
        %v530 = vadd.f32 %v522, 2.7525562e-06
        %v531 = vadd.f32 %v523, 2.7525562e-06
        %v532 = vadd.f32 %v524, 2.7525562e-06
        %v533 = vadd.f32 %v525, 2.7525562e-06
        %v534 = vadd.f32 %v526, 2.7525562e-06
        %v535 = vadd.f32 %v527, 2.7525562e-06
        %v536 = vadd.f32 %v528, 2.7525562e-06
        %v537 = vadd.f32 %v529, 2.7525562e-06
        %v538 = vmul.f32 %v530, %v514
        %v539 = vmul.f32 %v531, %v515
        %v540 = vmul.f32 %v532, %v516
        %v541 = vmul.f32 %v533, %v517
        %v542 = vmul.f32 %v534, %v518
        %v543 = vmul.f32 %v535, %v519
        %v544 = vmul.f32 %v536, %v520
        %v545 = vmul.f32 %v537, %v521
        %v546 = vadd.f32 %v538, -0.00019840874
        %v547 = vadd.f32 %v539, -0.00019840874
        %v548 = vadd.f32 %v540, -0.00019840874
        %v549 = vadd.f32 %v541, -0.00019840874
        %v550 = vadd.f32 %v542, -0.00019840874
        %v551 = vadd.f32 %v543, -0.00019840874
        %v552 = vadd.f32 %v544, -0.00019840874
        %v553 = vadd.f32 %v545, -0.00019840874
        %v554 = vmul.f32 %v546, %v514
        %v555 = vmul.f32 %v547, %v515
        %v556 = vmul.f32 %v548, %v516
        %v557 = vmul.f32 %v549, %v517
        %v558 = vmul.f32 %v550, %v518
        %v559 = vmul.f32 %v551, %v519
        %v560 = vmul.f32 %v552, %v520
        %v561 = vmul.f32 %v553, %v521
        %v562 = vadd.f32 %v554, 0.008333331
        %v563 = vadd.f32 %v555, 0.008333331
        %v564 = vadd.f32 %v556, 0.008333331
        %v565 = vadd.f32 %v557, 0.008333331
        %v566 = vadd.f32 %v558, 0.008333331
        %v567 = vadd.f32 %v559, 0.008333331
        %v568 = vadd.f32 %v560, 0.008333331
        %v569 = vadd.f32 %v561, 0.008333331
        %v570 = vmul.f32 %v562, %v514
        %v571 = vmul.f32 %v563, %v515
        %v572 = vmul.f32 %v564, %v516
        %v573 = vmul.f32 %v565, %v517
        %v574 = vmul.f32 %v566, %v518
        %v575 = vmul.f32 %v567, %v519
        %v576 = vmul.f32 %v568, %v520
        %v577 = vmul.f32 %v569, %v521
        %v578 = vadd.f32 %v570, -0.16666667
        %v579 = vadd.f32 %v571, -0.16666667
        %v580 = vadd.f32 %v572, -0.16666667
        %v581 = vadd.f32 %v573, -0.16666667
        %v582 = vadd.f32 %v574, -0.16666667
        %v583 = vadd.f32 %v575, -0.16666667
        %v584 = vadd.f32 %v576, -0.16666667
        %v585 = vadd.f32 %v577, -0.16666667
        %v586 = vmul.f32 %v458, %v514
        %v587 = vmul.f32 %v459, %v515
        %v588 = vmul.f32 %v460, %v516
        %v589 = vmul.f32 %v461, %v517
        %v590 = vmul.f32 %v462, %v518
        %v591 = vmul.f32 %v463, %v519
        %v592 = vmul.f32 %v464, %v520
        %v593 = vmul.f32 %v465, %v521
        %v594 = vmul.f32 %v586, %v578
        %v595 = vmul.f32 %v587, %v579
        %v596 = vmul.f32 %v588, %v580
        %v597 = vmul.f32 %v589, %v581
        %v598 = vmul.f32 %v590, %v582
        %v599 = vmul.f32 %v591, %v583
        %v600 = vmul.f32 %v592, %v584
        %v601 = vmul.f32 %v593, %v585
        %v602 = vadd.f32 %v458, %v594
        %v603 = vadd.f32 %v459, %v595
        %v604 = vadd.f32 %v460, %v596
        %v605 = vadd.f32 %v461, %v597
        %v606 = vadd.f32 %v462, %v598
        %v607 = vadd.f32 %v463, %v599
        %v608 = vadd.f32 %v464, %v600
        %v609 = vadd.f32 %v465, %v601
        %v610 = vmul.f32 %v506, %v602
        %v611 = vmul.f32 %v507, %v603
        %v612 = vmul.f32 %v508, %v604
        %v613 = vmul.f32 %v509, %v605
        %v614 = vmul.f32 %v510, %v606
        %v615 = vmul.f32 %v511, %v607
        %v616 = vmul.f32 %v512, %v608
        %v617 = vmul.f32 %v513, %v609
        %v618 = vld [vmem:[#allocation7] sm:$0xff]
        %v619 = vld [vmem:[#allocation7 + $0x8] sm:$0xff]
        %v620 = vld [vmem:[#allocation7 + $0x10] sm:$0xff]
        %v621 = vld [vmem:[#allocation7 + $0x18] sm:$0xff]
        %v622 = vld [vmem:[#allocation7 + $0x20] sm:$0xff]
        %v623 = vld [vmem:[#allocation7 + $0x28] sm:$0xff]
        %v624 = vld [vmem:[#allocation7 + $0x30] sm:$0xff]
        %v625 = vld [vmem:[#allocation7 + $0x38] sm:$0xff]
        %v626 = vld [vmem:[#allocation7 + $0x40] sm:$0xff]
        %v627 = vld [vmem:[#allocation7 + $0x48] sm:$0xff]
        %v628 = vld [vmem:[#allocation7 + $0x50] sm:$0xff]
        %v629 = vld [vmem:[#allocation7 + $0x58] sm:$0xff]
        %v630 = vld [vmem:[#allocation7 + $0x60] sm:$0xff]
        %v631 = vld [vmem:[#allocation7 + $0x68] sm:$0xff]
        %v632 = vld [vmem:[#allocation7 + $0x70] sm:$0xff]
        %v633 = vld [vmem:[#allocation7 + $0x78] sm:$0xff]
        %v634 = vld [vmem:[%s4] sm:$0x1]
        %v636 = vlaneseq
        %v637 = vshrl.u32 %v636, 7
        %v638 = vsub.s32 0, %v637
        %v639 = vrot.slane %v634, %v638
        %641 = vmatprep.subr.mxu0 0.0
        %642 = vmatpush1.msra.mxu0 %v633
        %643 = vmatprep.subr.mxu0 0.0
        %644 = vmatpush1.msra.mxu0 %v632
        %645 = vmatprep.subr.mxu0 0.0
        %646 = vmatpush1.msra.mxu0 %v631
        %647 = vmatprep.subr.mxu0 0.0
        %648 = vmatpush1.msra.mxu0 %v630
        %649 = vmatprep.subr.mxu0 0.0
        %650 = vmatpush1.msra.mxu0 %v629
        %651 = vmatprep.subr.mxu0 0.0
        %652 = vmatpush1.msra.mxu0 %v628
        %653 = vmatprep.subr.mxu0 0.0
        %654 = vmatpush1.msra.mxu0 %v627
        %655 = vmatprep.subr.mxu0 0.0
        %656 = vmatpush1.msra.mxu0 %v626
        %657 = vmatprep.subr.mxu0 0.0
        %658 = vmatpush1.msra.mxu0 %v625
        %659 = vmatprep.subr.mxu0 0.0
        %660 = vmatpush1.msra.mxu0 %v624
        %661 = vmatprep.subr.mxu0 0.0
        %662 = vmatpush1.msra.mxu0 %v623
        %663 = vmatprep.subr.mxu0 0.0
        %664 = vmatpush1.msra.mxu0 %v622
        %665 = vmatprep.subr.mxu0 0.0
        %666 = vmatpush1.msra.mxu0 %v621
        %667 = vmatprep.subr.mxu0 0.0
        %668 = vmatpush1.msra.mxu0 %v620
        %669 = vmatprep.subr.mxu0 0.0
        %670 = vmatpush1.msra.mxu0 %v619
        %671 = vmatprep.subr.mxu0 0.0
        %672 = vmatpush1.msra.mxu0 %v618
        %673 = vmatprep.subr.mxu0 0.0
        %674 = vmatpush2.msra.mxu0 0.0
        %675 = vmatprep.subr.mxu0 0.0
        %676 = vmatpush2.msra.mxu0 0.0
        %677 = vmatprep.subr.mxu0 0.0
        %678 = vmatpush2.msra.mxu0 0.0
        %679 = vmatprep.subr.mxu0 0.0
        %680 = vmatpush2.msra.mxu0 0.0
        %681 = vmatprep.subr.mxu0 0.0
        %682 = vmatpush2.msra.mxu0 0.0
        %683 = vmatprep.subr.mxu0 0.0
        %684 = vmatpush2.msra.mxu0 0.0
        %685 = vmatprep.subr.mxu0 0.0
        %686 = vmatpush2.msra.mxu0 0.0
        %687 = vmatprep.subr.mxu0 0.0
        %688 = vmatpush2.msra.mxu0 0.0
        %689 = vmatprep.subr.mxu0 0.0
        %690 = vmatpush2.msra.mxu0 0.0
        %691 = vmatprep.subr.mxu0 0.0
        %692 = vmatpush2.msra.mxu0 0.0
        %693 = vmatprep.subr.mxu0 0.0
        %694 = vmatpush2.msra.mxu0 0.0
        %695 = vmatprep.subr.mxu0 0.0
        %696 = vmatpush2.msra.mxu0 0.0
        %697 = vmatprep.subr.mxu0 0.0
        %698 = vmatpush2.msra.mxu0 0.0
        %699 = vmatprep.subr.mxu0 0.0
        %700 = vmatpush2.msra.mxu0 0.0
        %701 = vmatprep.subr.mxu0 0.0
        %702 = vmatpush2.msra.mxu0 0.0
        %703 = vmatprep.subr.mxu0 0.0
        %704 = vmatpush2.msra.mxu0 0.0
        %705 = vmatprep.mubr.f32.mxu0 0.0
        %706 = vmatmul.mubr.f32.gmra.mxu0 %v610
        %v707 = vpop.f32.mrf.mxu0
        %v708 = vadd.f32 %v639, %v707
        %v709 = vpop.f32.mrf.mxu0
        %710 = vmatprep.mubr.f32.mxu0 0.0
        %711 = vmatmul.mubr.f32.gmra.mxu0 %v611
        %v712 = vpop.f32.mrf.mxu0
        %v713 = vadd.f32 %v639, %v712
        %v714 = vpop.f32.mrf.mxu0
        %715 = vmatprep.mubr.f32.mxu0 0.0
        %716 = vmatmul.mubr.f32.gmra.mxu0 %v612
        %v717 = vpop.f32.mrf.mxu0
        %v718 = vadd.f32 %v639, %v717
        %v719 = vpop.f32.mrf.mxu0
        %720 = vmatprep.mubr.f32.mxu0 0.0
        %721 = vmatmul.mubr.f32.gmra.mxu0 %v613
        %v722 = vpop.f32.mrf.mxu0
        %v723 = vadd.f32 %v639, %v722
        %v724 = vpop.f32.mrf.mxu0
        %725 = vmatprep.mubr.f32.mxu0 0.0
        %726 = vmatmul.mubr.f32.gmra.mxu0 %v614
        %v727 = vpop.f32.mrf.mxu0
        %v728 = vadd.f32 %v639, %v727
        %v729 = vpop.f32.mrf.mxu0
        %730 = vmatprep.mubr.f32.mxu0 0.0
        %731 = vmatmul.mubr.f32.gmra.mxu0 %v615
        %v732 = vpop.f32.mrf.mxu0
        %v733 = vadd.f32 %v639, %v732
        %v734 = vpop.f32.mrf.mxu0
        %735 = vmatprep.mubr.f32.mxu0 0.0
        %736 = vmatmul.mubr.f32.gmra.mxu0 %v616
        %v737 = vpop.f32.mrf.mxu0
        %v738 = vadd.f32 %v639, %v737
        %v739 = vpop.f32.mrf.mxu0
        %740 = vmatprep.mubr.f32.mxu0 0.0
        %741 = vmatmul.mubr.f32.gmra.mxu0 %v617
        %v742 = vpop.f32.mrf.mxu0
        %v743 = vadd.f32 %v639, %v742
        %v744 = vpop.f32.mrf.mxu0
        %745 = vdwg.mxu0
        %v746 = vmul.f32 %v708, 0.31830987
        %v747 = vmul.f32 %v713, 0.31830987
        %v748 = vmul.f32 %v718, 0.31830987
        %v749 = vmul.f32 %v723, 0.31830987
        %v750 = vmul.f32 %v728, 0.31830987
        %v751 = vmul.f32 %v733, 0.31830987
        %v752 = vmul.f32 %v738, 0.31830987
        %v753 = vmul.f32 %v743, 0.31830987
        %v754 = vadd.f32 %v746, 0.5
        %v755 = vadd.f32 %v747, 0.5
        %v756 = vadd.f32 %v748, 0.5
        %v757 = vadd.f32 %v749, 0.5
        %v758 = vadd.f32 %v750, 0.5
        %v759 = vadd.f32 %v751, 0.5
        %v760 = vadd.f32 %v752, 0.5
        %v761 = vadd.f32 %v753, 0.5
        %v762 = vfloor.f32 %v754
        %v763 = vfloor.f32 %v755
        %v764 = vfloor.f32 %v756
        %v765 = vfloor.f32 %v757
        %v766 = vfloor.f32 %v758
        %v767 = vfloor.f32 %v759
        %v768 = vfloor.f32 %v760
        %v769 = vfloor.f32 %v761
        %v770 = vmul.f32 %v762, 3.140625
        %v771 = vmul.f32 %v763, 3.140625
        %v772 = vmul.f32 %v764, 3.140625
        %v773 = vmul.f32 %v765, 3.140625
        %v774 = vmul.f32 %v766, 3.140625
        %v775 = vmul.f32 %v767, 3.140625
        %v776 = vmul.f32 %v768, 3.140625
        %v777 = vmul.f32 %v769, 3.140625
        %v778 = vsub.f32 %v708, %v770
        %v779 = vsub.f32 %v713, %v771
        %v780 = vsub.f32 %v718, %v772
        %v781 = vsub.f32 %v723, %v773
        %v782 = vsub.f32 %v728, %v774
        %v783 = vsub.f32 %v733, %v775
        %v784 = vsub.f32 %v738, %v776
        %v785 = vsub.f32 %v743, %v777
        %v786 = vmul.f32 %v762, 0.0009676536
        %v787 = vmul.f32 %v763, 0.0009676536
        %v788 = vmul.f32 %v764, 0.0009676536
        %v789 = vmul.f32 %v765, 0.0009676536
        %v790 = vmul.f32 %v766, 0.0009676536
        %v791 = vmul.f32 %v767, 0.0009676536
        %v792 = vmul.f32 %v768, 0.0009676536
        %v793 = vmul.f32 %v769, 0.0009676536
        %v794 = vsub.f32 %v778, %v786
        %v795 = vsub.f32 %v779, %v787
        %v796 = vsub.f32 %v780, %v788
        %v797 = vsub.f32 %v781, %v789
        %v798 = vsub.f32 %v782, %v790
        %v799 = vsub.f32 %v783, %v791
        %v800 = vsub.f32 %v784, %v792
        %v801 = vsub.f32 %v785, %v793
        %v802 = vmul.f32 %v762, 0.5
        %v803 = vmul.f32 %v763, 0.5
        %v804 = vmul.f32 %v764, 0.5
        %v805 = vmul.f32 %v765, 0.5
        %v806 = vmul.f32 %v766, 0.5
        %v807 = vmul.f32 %v767, 0.5
        %v808 = vmul.f32 %v768, 0.5
        %v809 = vmul.f32 %v769, 0.5
        %v810 = vfloor.f32 %v802
        %v811 = vfloor.f32 %v803
        %v812 = vfloor.f32 %v804
        %v813 = vfloor.f32 %v805
        %v814 = vfloor.f32 %v806
        %v815 = vfloor.f32 %v807
        %v816 = vfloor.f32 %v808
        %v817 = vfloor.f32 %v809
        %v818 = vmul.f32 %v810, 2.0
        %v819 = vmul.f32 %v811, 2.0
        %v820 = vmul.f32 %v812, 2.0
        %v821 = vmul.f32 %v813, 2.0
        %v822 = vmul.f32 %v814, 2.0
        %v823 = vmul.f32 %v815, 2.0
        %v824 = vmul.f32 %v816, 2.0
        %v825 = vmul.f32 %v817, 2.0
        %v826 = vsub.f32 %v762, %v818
        %v827 = vsub.f32 %v763, %v819
        %v828 = vsub.f32 %v764, %v820
        %v829 = vsub.f32 %v765, %v821
        %v830 = vsub.f32 %v766, %v822
        %v831 = vsub.f32 %v767, %v823
        %v832 = vsub.f32 %v768, %v824
        %v833 = vsub.f32 %v769, %v825
        %v834 = vmul.f32 %v826, 2.0
        %v835 = vmul.f32 %v827, 2.0
        %v836 = vmul.f32 %v828, 2.0
        %v837 = vmul.f32 %v829, 2.0
        %v838 = vmul.f32 %v830, 2.0
        %v839 = vmul.f32 %v831, 2.0
        %v840 = vmul.f32 %v832, 2.0
        %v841 = vmul.f32 %v833, 2.0
        %v842 = vsub.f32 1.0, %v834
        %v843 = vsub.f32 1.0, %v835
        %v844 = vsub.f32 1.0, %v836
        %v845 = vsub.f32 1.0, %v837
        %v846 = vsub.f32 1.0, %v838
        %v847 = vsub.f32 1.0, %v839
        %v848 = vsub.f32 1.0, %v840
        %v849 = vsub.f32 1.0, %v841
        %v850 = vmul.f32 %v794, %v794
        %v851 = vmul.f32 %v795, %v795
        %v852 = vmul.f32 %v796, %v796
        %v853 = vmul.f32 %v797, %v797
        %v854 = vmul.f32 %v798, %v798
        %v855 = vmul.f32 %v799, %v799
        %v856 = vmul.f32 %v800, %v800
        %v857 = vmul.f32 %v801, %v801
        %v858 = vmul.f32 %v850, -2.3889859e-08
        %v859 = vmul.f32 %v851, -2.3889859e-08
        %v860 = vmul.f32 %v852, -2.3889859e-08
        %v861 = vmul.f32 %v853, -2.3889859e-08
        %v862 = vmul.f32 %v854, -2.3889859e-08
        %v863 = vmul.f32 %v855, -2.3889859e-08
        %v864 = vmul.f32 %v856, -2.3889859e-08
        %v865 = vmul.f32 %v857, -2.3889859e-08
        %v866 = vadd.f32 %v858, 2.7525562e-06
        %v867 = vadd.f32 %v859, 2.7525562e-06
        %v868 = vadd.f32 %v860, 2.7525562e-06
        %v869 = vadd.f32 %v861, 2.7525562e-06
        %v870 = vadd.f32 %v862, 2.7525562e-06
        %v871 = vadd.f32 %v863, 2.7525562e-06
        %v872 = vadd.f32 %v864, 2.7525562e-06
        %v873 = vadd.f32 %v865, 2.7525562e-06
        %v874 = vmul.f32 %v866, %v850
        %v875 = vmul.f32 %v867, %v851
        %v876 = vmul.f32 %v868, %v852
        %v877 = vmul.f32 %v869, %v853
        %v878 = vmul.f32 %v870, %v854
        %v879 = vmul.f32 %v871, %v855
        %v880 = vmul.f32 %v872, %v856
        %v881 = vmul.f32 %v873, %v857
        %v882 = vadd.f32 %v874, -0.00019840874
        %v883 = vadd.f32 %v875, -0.00019840874
        %v884 = vadd.f32 %v876, -0.00019840874
        %v885 = vadd.f32 %v877, -0.00019840874
        %v886 = vadd.f32 %v878, -0.00019840874
        %v887 = vadd.f32 %v879, -0.00019840874
        %v888 = vadd.f32 %v880, -0.00019840874
        %v889 = vadd.f32 %v881, -0.00019840874
        %v890 = vmul.f32 %v882, %v850
        %v891 = vmul.f32 %v883, %v851
        %v892 = vmul.f32 %v884, %v852
        %v893 = vmul.f32 %v885, %v853
        %v894 = vmul.f32 %v886, %v854
        %v895 = vmul.f32 %v887, %v855
        %v896 = vmul.f32 %v888, %v856
        %v897 = vmul.f32 %v889, %v857
        %v898 = vadd.f32 %v890, 0.008333331
        %v899 = vadd.f32 %v891, 0.008333331
        %v900 = vadd.f32 %v892, 0.008333331
        %v901 = vadd.f32 %v893, 0.008333331
        %v902 = vadd.f32 %v894, 0.008333331
        %v903 = vadd.f32 %v895, 0.008333331
        %v904 = vadd.f32 %v896, 0.008333331
        %v905 = vadd.f32 %v897, 0.008333331
        %v906 = vmul.f32 %v898, %v850
        %v907 = vmul.f32 %v899, %v851
        %v908 = vmul.f32 %v900, %v852
        %v909 = vmul.f32 %v901, %v853
        %v910 = vmul.f32 %v902, %v854
        %v911 = vmul.f32 %v903, %v855
        %v912 = vmul.f32 %v904, %v856
        %v913 = vmul.f32 %v905, %v857
        %v914 = vadd.f32 %v906, -0.16666667
        %v915 = vadd.f32 %v907, -0.16666667
        %v916 = vadd.f32 %v908, -0.16666667
        %v917 = vadd.f32 %v909, -0.16666667
        %v918 = vadd.f32 %v910, -0.16666667
        %v919 = vadd.f32 %v911, -0.16666667
        %v920 = vadd.f32 %v912, -0.16666667
        %v921 = vadd.f32 %v913, -0.16666667
        %v922 = vmul.f32 %v794, %v850
        %v923 = vmul.f32 %v795, %v851
        %v924 = vmul.f32 %v796, %v852
        %v925 = vmul.f32 %v797, %v853
        %v926 = vmul.f32 %v798, %v854
        %v927 = vmul.f32 %v799, %v855
        %v928 = vmul.f32 %v800, %v856
        %v929 = vmul.f32 %v801, %v857
        %v930 = vmul.f32 %v922, %v914
        %v931 = vmul.f32 %v923, %v915
        %v932 = vmul.f32 %v924, %v916
        %v933 = vmul.f32 %v925, %v917
        %v934 = vmul.f32 %v926, %v918
        %v935 = vmul.f32 %v927, %v919
        %v936 = vmul.f32 %v928, %v920
        %v937 = vmul.f32 %v929, %v921
        %v938 = vadd.f32 %v794, %v930
        %v939 = vadd.f32 %v795, %v931
        %v940 = vadd.f32 %v796, %v932
        %v941 = vadd.f32 %v797, %v933
        %v942 = vadd.f32 %v798, %v934
        %v943 = vadd.f32 %v799, %v935
        %v944 = vadd.f32 %v800, %v936
        %v945 = vadd.f32 %v801, %v937
        %v946 = vmul.f32 %v842, %v938
        %v947 = vmul.f32 %v843, %v939
        %v948 = vmul.f32 %v844, %v940
        %v949 = vmul.f32 %v845, %v941
        %v950 = vmul.f32 %v846, %v942
        %v951 = vmul.f32 %v847, %v943
        %v952 = vmul.f32 %v848, %v944
        %v953 = vmul.f32 %v849, %v945
        %v954 = vadd.f32 %v274, %v946
        %v955 = vadd.f32 %v275, %v947
        %v956 = vadd.f32 %v276, %v948
        %v957 = vadd.f32 %v277, %v949
        %v958 = vadd.f32 %v278, %v950
        %v959 = vadd.f32 %v279, %v951
        %v960 = vadd.f32 %v280, %v952
        %v961 = vadd.f32 %v281, %v953
        %v962 = vmul.f32 %v954, 0.5
        %v963 = vmul.f32 %v955, 0.5
        %v964 = vmul.f32 %v956, 0.5
        %v965 = vmul.f32 %v957, 0.5
        %v966 = vmul.f32 %v958, 0.5
        %v967 = vmul.f32 %v959, 0.5
        %v968 = vmul.f32 %v960, 0.5
        %v969 = vmul.f32 %v961, 0.5
        %970 = vst [vmem:[%s271] sm:$0xff] %v962
        %971 = vst [vmem:[%s271 + $0x8] sm:$0xff] %v963
        %972 = vst [vmem:[%s271 + $0x10] sm:$0xff] %v964
        %973 = vst [vmem:[%s271 + $0x18] sm:$0xff] %v965
        %974 = vst [vmem:[%s271 + $0x20] sm:$0xff] %v966
        %975 = vst [vmem:[%s271 + $0x28] sm:$0xff] %v967
        %976 = vst [vmem:[%s271 + $0x30] sm:$0xff] %v968
        %977 = vst [vmem:[%s271 + $0x38] sm:$0xff] %v969
        %s978 = sand.u32 %s141, 1
        %s979 = scalar_lea.sflag [#allocation4], %s978
        %s980 = sand.u32 %s141, 1
        %s981 = smul.addr %s980, 64
        %s982 = scalar_lea.vmem [#allocation8], %s981
        // Predicated region
        $region53: #{tpu_custom_call.1} parent=39 // pred_check
          %p983 = pneg %p151
        $region54: #{tpu_custom_call.1} parent=39 // pred_check_branch
          %985 = sbr.rel (%p983) target = $region56
        $region55: #{tpu_custom_call.1} parent=39 // pred_region
          %s986 = smul.u32 8, %s23
          %s988 = ssub.s32 1024, 1024
          %989 = vsyncadd %s979, %s988
          %s990 = smul.addr %s986, 128
          %s991 = scalar_lea.hbm %s5, %s990
          %s992 = sshll.u32 %s982, 4
          %s993 = int_to_ptr.vmem [resolvable:$true] %s992
          %998 = dma.vmem_to_hbm [thread:$0]  %s993, 1024, %s991, %s979, 128, 128, 8
        $region56: #{tpu_custom_call.1} parent=39 // pred_fallthru
          _
      $region40: #{tpu_custom_call.1} parent=5 // pred_fallthru
        _
      %p999 = scmp.le.s32.totalorder 2, %s18
      // Predicated region
      $region57: #{tpu_custom_call.1} parent=5 // pred_check
        %p1000 = pneg %p999
      $region58: #{tpu_custom_call.1} parent=5 // pred_check_branch
        %1002 = sbr.rel (%p1000) target = $region60
      $region59: #{tpu_custom_call.1} parent=5 // pred_region
        %s1003 = ssub.s32 %s18, 2
        // Predicated region
        $region61: #{tpu_custom_call.1} parent=59 // pred_check
          %p1004 = pneg %p157
        $region62: #{tpu_custom_call.1} parent=59 // pred_check_branch
          %1006 = sbr.rel (%p1004) target = $region64
        $region63: #{tpu_custom_call.1} parent=59 // pred_region
          %s1007 = sand.u32 %s142, 1
          %s1008 = scalar_lea.sflag [#allocation4], %s1007
          %s1009 = sand.u32 %s142, 1
          %s1010 = smul.addr %s1009, 64
          %s1011 = scalar_lea.vmem [#allocation8], %s1010
          %1012 = dma.done %s1008, 1024
        $region64: #{tpu_custom_call.1} parent=59 // pred_fallthru
          _
      $region60: #{tpu_custom_call.1} parent=5 // pred_fallthru
        _
    $region6: #{tpu_custom_call.1} parent=1 // loop_footer
      %s22 = sadd.s32 1, %s18
    $region7: #{tpu_custom_call.1} parent=1 // loop_footer_branch
      %17 = sbr.rel target = $region3
    $region8: #{tpu_custom_call.1} parent=1 // loop_exit
      _
    %1013 = vsyncpa [#allocation3], 1
    %s1014 = scalar_lea.sflag [#allocation3], 1
    %1015 = vsyncpa %s1014, 1
    %1016 = vsyncpa [#allocation6], 1
    %1017 = vsyncpa [#allocation4], 1
    %s1018 = scalar_lea.sflag [#allocation4], 1
    %1019 = vsyncpa %s1018, 1

</llo_original>
